<compile_context>
chip_gen: v7x
topology: tpu7x:2x2x1
jax: 0.10.0
libtpu: 0.0.40
codegen_flags: <defaults>
</compile_context>

<pallas_src>
import functools
import math

import jax
import jax.numpy as jnp
from jax.experimental import pallas as pl
from jax.experimental.pallas import tpu as pltpu

# ---------------- config (small shapes, structure of the reference module) ---
KERNEL_SIZE = 5                       # SplineConv kernel_size
DIM = 3                               # SplineConv dim
P_BASIS = KERNEL_SIZE ** DIM          # 125 spline weight matrices per conv
LAYER_SIZES = [8, 16, 32, 32]         # torch default [64, 128, 256, 512] (shrunk)
VOXEL_SIZES = [20.0, 30.0, 50.0, 80.0]
POOL_SIZE = 8                         # MaxPoolingX size (torch default 64, shrunk)
FC1_OUT = 64                          # torch default 1024 (shrunk)
N_CLASSES = 4
POS_RANGE = 100.0
BN_EPS = 1e-5
VMEM_LIMIT = 32 * 1024 * 1024         # safe on v5e/v6e/v7x


def _round_up(x, m):
    return ((x + m - 1) // m) * m


# ---------------------------- Pallas kernels ---------------------------------
def _node_matmul_kernel(x_ref, w_ref, o_ref):
    """Single-K-tile MXU matmul; output tile is lane-dense (tn multiple of 128)."""
    o_ref[...] = jnp.dot(x_ref[...], w_ref[...],
                         preferred_element_type=jnp.float32)


def matmul_lane_dense(x, w_padded):
    """(M,K) f32 activations @ pre-padded (Kp,Np) bf16 weights -> (M,Np) f32.

    K is small (<= channel count) so it fits a single tile; grid is parallel
    over (M tiles, lane-dense N tiles) -> megacore friendly, no K accumulator.
    """
    M, K = x.shape
    Kp, Np = w_padded.shape
    Mp = _round_up(max(M, 16), 16)     # 16-row pad for bf16 sublane packing
    xp = jnp.zeros((Mp, Kp), jnp.bfloat16).at[:M, :K].set(x.astype(jnp.bfloat16))
    tn = 512 if Np % 512 == 0 else (256 if Np % 256 == 0 else 128)
    tm = 128 if Mp % 128 == 0 else Mp
    out = pl.pallas_call(
        _node_matmul_kernel,
        out_shape=jax.ShapeDtypeStruct((Mp, Np), jnp.float32),
        grid_spec=pltpu.PrefetchScalarGridSpec(
            num_scalar_prefetch=0,
            grid=(Mp // tm, Np // tn),
            in_specs=[pl.BlockSpec((tm, Kp), lambda i, j: (i, 0)),
                      pl.BlockSpec((Kp, tn), lambda i, j: (0, j))],
            out_specs=pl.BlockSpec((tm, tn), lambda i, j: (i, j)),
        ),
        compiler_params=pltpu.CompilerParams(
            dimension_semantics=("parallel", "parallel"),
            vmem_limit_bytes=VMEM_LIMIT),
    )(xp, w_padded)
    return out[:M, :]


def _conv_root_kernel(x_ref, w_ref, agg_ref, bias_ref, scale_ref, shift_ref, o_ref):
    """Fused: (x @ root) + agg + bias -> ELU -> BatchNorm(eval) affine."""
    r = jnp.dot(x_ref[...], w_ref[...], preferred_element_type=jnp.float32)
    r = r + agg_ref[...] + bias_ref[...]
    e = jnp.where(r > 0.0, r, jnp.expm1(r))
    o_ref[...] = e * scale_ref[...] + shift_ref[...]


def conv_root_epilogue(x, agg, lp):
    N, Cin = x.shape
    w = lp["root"]
    Kp, NpR = w.shape
    Cout = lp["cout"]
    Mp = _round_up(max(N, 16), 16)
    xp = jnp.zeros((Mp, Kp), jnp.bfloat16).at[:N, :Cin].set(x.astype(jnp.bfloat16))
    aggp = jnp.zeros((Mp, NpR), jnp.float32).at[:N, :Cout].set(agg)
    tm = 128 if Mp % 128 == 0 else Mp
    out = pl.pallas_call(
        _conv_root_kernel,
        out_shape=jax.ShapeDtypeStruct((Mp, NpR), jnp.float32),
        grid_spec=pltpu.PrefetchScalarGridSpec(
            num_scalar_prefetch=0, grid=(Mp // tm,),
            in_specs=[pl.BlockSpec((tm, Kp), lambda i: (i, 0)),
                      pl.BlockSpec((Kp, NpR), lambda i: (0, 0)),
                      pl.BlockSpec((tm, NpR), lambda i: (i, 0)),
                      pl.BlockSpec((1, NpR), lambda i: (0, 0)),
                      pl.BlockSpec((1, NpR), lambda i: (0, 0)),
                      pl.BlockSpec((1, NpR), lambda i: (0, 0))],
            out_specs=pl.BlockSpec((tm, NpR), lambda i: (i, 0)),
        ),
        compiler_params=pltpu.CompilerParams(
            dimension_semantics=("parallel",)),
    )(xp, w, aggp, lp["bias_row"], lp["scale_row"], lp["shift_row"])
    return out[:N, :Cout]


def _head_kernel(h_ref, w1_ref, b1_ref, w2_ref, b2_ref, o_ref, *, n_classes):
    """Fused fc1 + ELU + fc2 + log_softmax (dropout is identity in eval mode)."""
    a = jnp.dot(h_ref[...], w1_ref[...], preferred_element_type=jnp.float32)
    a = a + b1_ref[...]
    a = jnp.where(a > 0.0, a, jnp.expm1(a))
    z = jnp.dot(a.astype(w2_ref.dtype), w2_ref[...],
                preferred_element_type=jnp.float32) + b2_ref[...]
    col = jax.lax.broadcasted_iota(jnp.int32, z.shape, 1)
    z = jnp.where(col < n_classes, z, -1e30)          # mask padded class columns
    m = jnp.max(z, axis=-1, keepdims=True)
    s = z - m
    lse = jnp.log(jnp.sum(jnp.exp(s), axis=-1, keepdims=True))
    o_ref[...] = s - lse


def head_pallas(h, params):
    B, K = h.shape
    w1 = params["fc1_wp"]
    w2 = params["fc2_wp"]
    K1P, F1P = w1.shape
    _, N2P = w2.shape
    Mp = _round_up(max(B, 16), 16)
    hp = jnp.zeros((Mp, K1P), jnp.bfloat16).at[:B, :K].set(h.astype(jnp.bfloat16))
    out = pl.pallas_call(
        functools.partial(_head_kernel, n_classes=N_CLASSES),
        out_shape=jax.ShapeDtypeStruct((Mp, N2P), jnp.float32),
        grid_spec=pltpu.PrefetchScalarGridSpec(
            num_scalar_prefetch=0, grid=(1,),
            in_specs=[pl.BlockSpec((Mp, K1P), lambda i: (0, 0)),
                      pl.BlockSpec((K1P, F1P), lambda i: (0, 0)),
                      pl.BlockSpec((1, F1P), lambda i: (0, 0)),
                      pl.BlockSpec((F1P, N2P), lambda i: (0, 0)),
                      pl.BlockSpec((1, N2P), lambda i: (0, 0))],
            out_specs=pl.BlockSpec((Mp, N2P), lambda i: (0, 0)),
        ),
    )(hp, w1, params["fc1_b_row"], w2, params["fc2_b_row"])
    return out[:B, :N_CLASSES]


# ---------------------------- SplineConv / ConvBlock --------------------------
def spline_basis_sparse(edge_attr, edge_mask):
    """Degree-1 open B-spline basis (torch_spline_conv semantics), sparse form.
    Returns flat kernel indices (E, 8) int32 and weights (E, 8) f32 (masked edges -> 0).
    Vectorized build: no serial scatters."""
    K = KERNEL_SIZE
    u = jnp.clip(edge_attr, 0.0, 1.0)
    v = u * (K - 1)
    lo = jnp.clip(jnp.floor(v), 0, K - 2).astype(jnp.int32)          # (E, DIM)
    frac = v - lo.astype(jnp.float32)                                # (E, DIM)
    combos = jnp.arange(2 ** DIM, dtype=jnp.int32)                   # (8,)
    sel = (combos[:, None] >> jnp.arange(DIM, dtype=jnp.int32)[None, :]) & 1  # (8, DIM)
    idx_sel = lo[:, None, :] + sel[None, :, :]                       # (E, 8, DIM)
    wgt_sel = jnp.where(sel[None, :, :] == 1,
                        frac[:, None, :], 1.0 - frac[:, None, :])    # (E, 8, DIM)
    kpow = jnp.array([K ** d for d in range(DIM)], jnp.int32)        # [1, 5, 25]
    flat = jnp.sum(idx_sel * kpow[None, None, :], axis=-1)           # (E, 8)
    w8 = jnp.prod(wgt_sel, axis=-1) * edge_mask[:, None].astype(jnp.float32)
    return flat.astype(jnp.int32), w8


def conv_block(x, edge_index, edge_attr, edge_mask, node_mask, lp):
    """SplineConv(in, out, dim=3, kernel_size=5, degree=1, aggr='mean') -> ELU -> BN(eval).

    Node-side form: T[n] = x[n] @ W[p] for all p (one lane-dense MXU matmul), then each
    edge combines its 8 nonzero basis taps by gather + weighted sum.
    """
    N, Cin = x.shape
    Cout = lp["cout"]
    src = jnp.clip(edge_index[0], 0, N - 1)
    dst = jnp.clip(edge_index[1], 0, N - 1)

    flat, w8 = spline_basis_sparse(edge_attr, edge_mask)             # (E, 8) each

    # node-side spline transform: T[n, p*Cout:(p+1)*Cout] = x[n] @ W[p]   (Pallas MXU)
    T = matmul_lane_dense(x, lp["w_node"])                           # (N, Np) f32
    T = T[:, :P_BASIS * Cout].reshape(N * P_BASIS, Cout)

    # TODO(synk): data-dependent per-edge gather + segment-mean scatter have no clean
    # Pallas equivalent; done with advanced indexing / jax.ops.segment_* glue.
    gidx = src[:, None] * P_BASIS + flat                             # (E, 8)
    msg = jnp.sum(w8[:, :, None] * T[gidx], axis=1)                  # (E, Cout)
    summed = jax.ops.segment_sum(msg, dst, num_segments=N)
    cnt = jax.ops.segment_sum(edge_mask.astype(jnp.float32), dst, num_segments=N)
    agg = summed / jnp.maximum(cnt, 1.0)[:, None]

    # fused root matmul + aggregate + bias + ELU + BatchNorm affine   (Pallas MXU)
    y = conv_root_epilogue(x, agg, lp)
    return y * node_mask[:, None]


# ---------------------------- voxel pooling (glue) ----------------------------
def voxel_cluster(pos, batch, voxel_size):
    n_cells = int(math.ceil(POS_RANGE / voxel_size)) + 1
    c = jnp.floor(pos / voxel_size).astype(jnp.int32)
    cid = c[:, 0] + c[:, 1] * n_cells + c[:, 2] * n_cells ** 2
    return cid + batch * (n_cells ** 3)


def max_pool_graph(x, pos, batch, edge_index, node_mask, edge_mask, voxel_size):
    """torch_geometric max_pool(voxel_grid(...), transform=Cartesian(cat=False)),
    expressed with static padded shapes (validity carried via masks).
    TODO(synk): dynamic-shape graph coarsening has no Pallas equivalent; padded glue."""
    N = x.shape[0]
    E = edge_index.shape[1]
    BIG = jnp.int32(2 ** 30)
    cid = jnp.where(node_mask, voxel_cluster(pos, batch, voxel_size), BIG)
    uniq, inv = jnp.unique(cid, size=N, fill_value=BIG, return_inverse=True)
    new_node_mask = uniq != BIG

    neg = jnp.float32(-1e30)
    new_x = jax.ops.segment_max(jnp.where(node_mask[:, None], x, neg), inv,
                                num_segments=N)
    new_x = jnp.where(new_node_mask[:, None], new_x, 0.0)
    cnt = jax.ops.segment_sum(node_mask.astype(jnp.float32), inv, num_segments=N)
    new_pos = jax.ops.segment_sum(pos * node_mask[:, None], inv, num_segments=N)
    new_pos = jnp.where(new_node_mask[:, None],
                        new_pos / jnp.maximum(cnt, 1.0)[:, None], 0.0)
    new_batch = jax.ops.segment_max(jnp.where(node_mask, batch, 0), inv,
                                    num_segments=N)
    new_batch = jnp.where(new_node_mask, new_batch, 0)

    # remap + coalesce edges (drop self loops and duplicates)
    ns = inv[jnp.clip(edge_index[0], 0, N - 1)]
    nd = inv[jnp.clip(edge_index[1], 0, N - 1)]
    valid = edge_mask & (ns != nd)
    sentinel = jnp.int32(N * N)
    eid = jnp.where(valid, ns * N + nd, sentinel)
    ue = jnp.unique(eid, size=E, fill_value=sentinel)
    new_edge_mask = ue != sentinel
    new_src = jnp.where(new_edge_mask, ue // N, 0).astype(jnp.int32)
    new_dst = jnp.where(new_edge_mask, ue % N, 0).astype(jnp.int32)
    new_edge_index = jnp.stack([new_src, new_dst])

    # Cartesian(cat=False, norm=True): attr = (pos[src]-pos[dst]) / (2*max|.|) + 0.5
    cart = (new_pos[new_src] - new_pos[new_dst]) * new_edge_mask[:, None]
    max_abs = jnp.maximum(jnp.max(jnp.abs(cart)), 1e-12)
    new_attr = jnp.where(new_edge_mask[:, None], cart / (2.0 * max_abs) + 0.5, 0.0)
    return (new_x, new_pos, new_batch, new_edge_index, new_attr,
            new_node_mask, new_edge_mask)


def max_pool_x_fixed(x, pos, batch, node_mask, voxel_size, size, batch_size):
    """max_pool_x(voxel_grid(...), x, batch, size=size) -> (batch_size*size, F)."""
    n_cells = int(math.ceil(POS_RANGE / voxel_size))
    c = jnp.floor(pos / voxel_size).astype(jnp.int32)
    local = c[:, 0] + c[:, 1] * n_cells + c[:, 2] * n_cells ** 2
    # TODO(synk): exact PyG voxel_grid cell numbering not reproduced; clusters are
    # assumed to fit in `size` slots per graph (true for this voxel size / pos range).
    local = jnp.clip(local, 0, size - 1)
    idx = jnp.where(node_mask, batch * size + local, batch_size * size)
    neg = jnp.float32(-1e30)
    out = jax.ops.segment_max(jnp.where(node_mask[:, None], x, neg), idx,
                              num_segments=batch_size * size + 1)[:batch_size * size]
    return jnp.where(out <= -1e29, 0.0, out)   # empty clusters -> 0


# ---------------------------- Net: params + forward ---------------------------
def init_params(key):
    """All weights are pre-padded / pre-fused once here (bf16 MXU tiles, f32 rows)."""
    params = {"convs": []}
    in_ch = 1
    for out_ch in LAYER_SIZES:
        key, k1, k2 = jax.random.split(key, 3)
        fan = P_BASIS * in_ch
        weight = jax.random.normal(k1, (P_BASIS, in_ch, out_ch), jnp.float32) \
            / jnp.sqrt(jnp.float32(fan))
        root = jax.random.normal(k2, (in_ch, out_ch), jnp.float32) \
            / jnp.sqrt(jnp.float32(max(in_ch, 1)))
        bias = jnp.zeros((out_ch,), jnp.float32)
        gamma = jnp.ones((out_ch,), jnp.float32)
        beta = jnp.zeros((out_ch,), jnp.float32)
        mean = jnp.zeros((out_ch,), jnp.float32)
        var = jnp.ones((out_ch,), jnp.float32)

        kp = _round_up(in_ch, 16)
        np_node = _round_up(P_BASIS * out_ch, 128)
        np_root = _round_up(out_ch, 128)
        # node-side layout: W_node[k, p*Cout + c] = W[p, k, c]
        w_node = weight.transpose(1, 0, 2).reshape(in_ch, P_BASIS * out_ch)
        scale = gamma / jnp.sqrt(var + BN_EPS)          # BatchNorm eval affine
        shift = beta - mean * scale
        params["convs"].append({
            "cout": out_ch,
            "w_node": jnp.zeros((kp, np_node), jnp.bfloat16)
                      .at[:in_ch, :P_BASIS * out_ch].set(w_node.astype(jnp.bfloat16)),
            "root": jnp.zeros((kp, np_root), jnp.bfloat16)
                    .at[:in_ch, :out_ch].set(root.astype(jnp.bfloat16)),
            "bias_row": jnp.zeros((1, np_root), jnp.float32).at[0, :out_ch].set(bias),
            "scale_row": jnp.zeros((1, np_root), jnp.float32).at[0, :out_ch].set(scale),
            "shift_row": jnp.zeros((1, np_root), jnp.float32).at[0, :out_ch].set(shift),
        })
        in_ch = out_ch

    key, k1, k2, k3, k4 = jax.random.split(key, 5)
    fc1_in = POOL_SIZE * LAYER_SIZES[-1]
    fc1_w = jax.random.normal(k1, (fc1_in, FC1_OUT), jnp.float32) \
        / jnp.sqrt(jnp.float32(fc1_in))
    fc1_b = jax.random.normal(k2, (FC1_OUT,), jnp.float32) * 0.01
    fc2_w = jax.random.normal(k3, (FC1_OUT, N_CLASSES), jnp.float32) \
        / jnp.sqrt(jnp.float32(FC1_OUT))
    fc2_b = jax.random.normal(k4, (N_CLASSES,), jnp.float32) * 0.01
    k1p = _round_up(fc1_in, 16)
    f1p = _round_up(FC1_OUT, 128)
    n2p = _round_up(N_CLASSES, 128)
    params["fc1_wp"] = jnp.zeros((k1p, f1p), jnp.bfloat16) \
        .at[:fc1_in, :FC1_OUT].set(fc1_w.astype(jnp.bfloat16))
    params["fc1_b_row"] = jnp.zeros((1, f1p), jnp.float32).at[0, :FC1_OUT].set(fc1_b)
    params["fc2_wp"] = jnp.zeros((f1p, n2p), jnp.bfloat16) \
        .at[:FC1_OUT, :N_CLASSES].set(fc2_w.astype(jnp.bfloat16))
    params["fc2_b_row"] = jnp.zeros((1, n2p), jnp.float32).at[0, :N_CLASSES].set(fc2_b)
    return params


def net_forward(params, x, pos, batch, edge_index, edge_attr, batch_size):
    N = x.shape[0]
    E = edge_index.shape[1]
    node_mask = jnp.ones((N,), bool)
    edge_mask = jnp.ones((E,), bool)
    n_layers = len(LAYER_SIZES)
    pooled = None
    for layer in range(n_layers):
        x = conv_block(x, edge_index, edge_attr, edge_mask, node_mask,
                       params["convs"][layer])
        if layer + 1 != n_layers:
            (x, pos, batch, edge_index, edge_attr,
             node_mask, edge_mask) = max_pool_graph(
                 x, pos, batch, edge_index, node_mask, edge_mask,
                 VOXEL_SIZES[layer])
        else:
            pooled = max_pool_x_fixed(x, pos, batch, node_mask,
                                      VOXEL_SIZES[layer], POOL_SIZE, batch_size)
    h = pooled.reshape(batch_size, POOL_SIZE * LAYER_SIZES[-1])
    # fc1 + ELU + dropout(eval=identity) + fc2 + log_softmax, one fused Pallas kernel
    return head_pallas(h, params)


# ---------------------------- main --------------------------------------------
if __name__ == "__main__":
    key = jax.random.PRNGKey(0)
    batch_size = 2
    nodes_per_graph = 64
    edges_per_graph = 128
    N = batch_size * nodes_per_graph
    E = batch_size * edges_per_graph

    key, kx, kp, ks, kd = jax.random.split(key, 5)
    x = jax.random.normal(kx, (N, 1), jnp.float32)
    pos = jax.random.uniform(kp, (N, 3), jnp.float32, 0.0, POS_RANGE - 1e-3)
    batch = jnp.repeat(jnp.arange(batch_size, dtype=jnp.int32), nodes_per_graph)
    src = jnp.concatenate([
        b * nodes_per_graph + jax.random.randint(
            jax.random.fold_in(ks, b), (edges_per_graph,), 0, nodes_per_graph)
        for b in range(batch_size)]).astype(jnp.int32)
    dst = jnp.concatenate([
        b * nodes_per_graph + jax.random.randint(
            jax.random.fold_in(kd, b), (edges_per_graph,), 0, nodes_per_graph)
        for b in range(batch_size)]).astype(jnp.int32)
    edge_index = jnp.stack([src, dst])
    # dataset-level transform T.Cartesian(cat=False): edge_attr from positions
    cart = pos[src] - pos[dst]
    edge_attr = cart / (2.0 * jnp.maximum(jnp.max(jnp.abs(cart)), 1e-12)) + 0.5

    params = init_params(jax.random.PRNGKey(42))
    out = net_forward(params, x, pos, batch, edge_index, edge_attr, batch_size)
    out = jax.block_until_ready(out)
    assert out.shape == (batch_size, N_CLASSES)
    assert bool(jnp.all(jnp.isfinite(out)))
    print("KERNEL_OK")
</pallas_src>

<mosaic_0001>
module attributes {stable_mosaic.version = 11 : i64} {
  func.func @_node_matmul_kernel(%arg0: i32, %arg1: i32, %arg2: memref<128x16xbf16, #tpu.memory_space<vmem>>, %arg3: memref<16x512xbf16, #tpu.memory_space<vmem>>, %arg4: memref<128x512xf32, #tpu.memory_space<vmem>>) attributes {dimension_semantics = [#tpu.dimension_semantics<parallel>, #tpu.dimension_semantics<parallel>], iteration_bounds = array<i64: 1, 2>, scalar_prefetch = 0 : i64, scratch_operands = 0 : i64, tpu.core_type = #tpu.core_type<tc>, window_params = [{transform_indices = @transform_0, window_bounds = array<i64: 128, 16>}, {transform_indices = @transform_1, window_bounds = array<i64: 16, 512>}, {transform_indices = @transform_2, window_bounds = array<i64: 128, 512>}]} {
    %c0 = arith.constant 0 : index
    %c0_0 = arith.constant 0 : index
    %0 = vector.load %arg2[%c0, %c0_0] : memref<128x16xbf16, #tpu.memory_space<vmem>>, vector<128x16xbf16>
    %c0_1 = arith.constant 0 : index
    %c0_2 = arith.constant 0 : index
    %1 = vector.load %arg3[%c0_1, %c0_2] : memref<16x512xbf16, #tpu.memory_space<vmem>>, vector<16x512xbf16>
    %cst = arith.constant dense<0.000000e+00> : vector<128x512xf32>
    %2 = tpu.matmul %0, %1, %cst {dimension_numbers = #tpu.dot_dimension_numbers<[1], [0], [0], [1], [0, 0, 1, 1], [], []>} : vector<128x16xbf16>, vector<16x512xbf16>, vector<128x512xf32> -> vector<128x512xf32>
    %c0_3 = arith.constant 0 : index
    %c0_4 = arith.constant 0 : index
    %3 = vector.load %arg4[%c0_3, %c0_4] : memref<128x512xf32, #tpu.memory_space<vmem>>, vector<128x512xf32>
    tpu.vector_store %arg4[%c0_3, %c0_4], %2 {strides = array<i32>} : memref<128x512xf32, #tpu.memory_space<vmem>>, vector<128x512xf32>,
    return
  }
  func.func @transform_0(%arg0: i32, %arg1: i32) -> (i32, i32) {
    %c0_i32 = arith.constant 0 : i32
    %c0_i32_0 = arith.constant 0 : i32
    return %arg0, %c0_i32 : i32, i32
  }
  func.func @transform_1(%arg0: i32, %arg1: i32) -> (i32, i32) {
    %c0_i32 = arith.constant 0 : i32
    %c0_i32_0 = arith.constant 0 : i32
    return %c0_i32, %arg1 : i32, i32
  }
  func.func @transform_2(%arg0: i32, %arg1: i32) -> (i32, i32) {
    %c0_i32 = arith.constant 0 : i32
    return %arg0, %arg1 : i32, i32
  }
}

</mosaic_0001>

<llo_original>
// kernel: tpu_custom_call.1
$region0: #{tpu_custom_call.1}
  #allocation0 [shape = 'u32[]', space=smem, size = 0x4, offset = 0x4, fixed_abs, tag = 'smem constant byte address 0x4 - core index']
  #allocation1 [shape = 'u32[144,128]{1,0:T(1,128)}', space=vmem, size = 0x12000, scoped, tag = 'internal scratch']
  %s0 = inlined_call_operand.vmem [shape: bf16[128,16], index: 0, kind: input, shape index: {}]
  %s1 = inlined_call_operand.vmem [shape: bf16[16,1024], index: 1, kind: input, shape index: {}]
  %s2 = inlined_call_operand.hbm [shape: f32[128,1024], index: 2, kind: output, shape index: {}]
  %s3 = sld [smem:[#allocation0]]
  $region64: #{tpu_custom_call.1} parent=0
    _
  %s5 = ssub.s32 1, %s3
  %s6 = scalar_select 0, %s5, %s3
  $region1: #{tpu_custom_call.1} parent=0
    #allocation2 [shape = 'u8[32768]{0}', space=vmem, size = 0x8000, scoped, tag = 'input window, operand 1']
    #allocation3 [shape = 'u8[524288]{0}', space=vmem, size = 0x80000, scoped, tag = 'output window, operand 0']
    #allocation4 [shape = 's32[2]{0}', space=sflag, size = 0x8, scoped, tag = 'scoped memory for tpu_custom_call.1']
    %7 = vsyncpa [#allocation4], 0
    %s8 = scalar_lea.sflag [#allocation4], 1
    %9 = vsyncpa %s8, 0
    loop: start=0, step=1, limit=4
    $region2: #{tpu_custom_call.1} parent=1 // loop_pre_header
      _
    $region3: #{tpu_custom_call.1} parent=1 // loop_header
      %s11 = sphi 0, %s15
      %p12 = scmp.ge.s32.totalorder %s11, 4
      %s18 = sphi 0, %s30
      %s19 = sphi 0, %s26
      %s20 = sphi 0, %s18
      %s21 = sphi 0, %s19
      %s22 = sphi 0, %s20
      %s23 = sphi 0, %s21
      %s33 = sphi 0, %s35
      %s36 = sphi 0, %s33
      %s37 = sphi 0, %s36
      %s53 = sphi 0, %s37
      %s59 = sphi 0, %s61
      %s62 = sphi 0, %s59
      %s63 = sphi 0, %s62
      %s79 = sphi 0, %s63
      %s87 = sphi 0, %s89
      %s90 = sphi 0, %s87
      %s91 = sphi 0, %s90
      %s107 = sphi 0, %s91
    $region4: #{tpu_custom_call.1} parent=1 // loop_header_branch
      %14 = sbr.rel (%p12) target = $region8
    $region5: #{tpu_custom_call.1} parent=1 // loop_body
      %s16 = ssub.s32 %s11, 1
      %s17 = ssub.s32 %s11, 2
      %s24 = sadd.s32 1, %s19
      %p25 = scmp.ge.s32.totalorder %s24, 2
      %s26 = scalar_select %p25, 0, %s24
      %s27 = sadd.s32 1, %s18
      %s28 = scalar_select %p25, %s27, %s18
      %p29 = scmp.ge.s32.totalorder %s28, 1
      %s30 = scalar_select %p29, 0, %s28
      %s31 = ssub.s32 %s18, %s30
      %p32 = scmp.eq.s32.totalorder %s31, 0
      %s34 = sadd.s32 %s33, 1
      %s35 = scalar_select %p32, %s33, %s34
      %p38 = pneg %p32
      %p39 = scmp.eq.s32.totalorder %s11, 1
      %p40 = por %p38, %p39
      %p41 = scmp.ne.s32.totalorder %s33, %s36
      %p42 = scmp.eq.s32.totalorder %s11, 0
      %p43 = por %p41, %p42
      %p44 = scmp.ne.s32.totalorder %s33, %s36
      %p45 = scmp.eq.s32.totalorder %s16, 1
      %p46 = por %p44, %p45
      %p47 = scmp.ne.s32.totalorder %s36, %s37
      %p48 = scmp.eq.s32.totalorder %s16, 0
      %p49 = por %p47, %p48
      %p50 = scmp.ne.s32.totalorder %s36, %s37
      %p51 = scmp.eq.s32.totalorder %s17, 1
      %p52 = por %p50, %p51
      %p54 = scmp.ne.s32.totalorder %s37, %s53
      %p55 = scmp.eq.s32.totalorder %s17, 0
      %p56 = por %p54, %p55
      %s57 = ssub.s32 %s19, %s26
      %p58 = scmp.eq.s32.totalorder %s57, 0
      %s60 = sadd.s32 %s59, 1
      %s61 = scalar_select %p58, %s59, %s60
      %p64 = pneg %p58
      %p65 = scmp.eq.s32.totalorder %s11, 1
      %p66 = por %p64, %p65
      %p67 = scmp.ne.s32.totalorder %s59, %s62
      %p68 = scmp.eq.s32.totalorder %s11, 0
      %p69 = por %p67, %p68
      %p70 = scmp.ne.s32.totalorder %s59, %s62
      %p71 = scmp.eq.s32.totalorder %s16, 1
      %p72 = por %p70, %p71
      %p73 = scmp.ne.s32.totalorder %s62, %s63
      %p74 = scmp.eq.s32.totalorder %s16, 0
      %p75 = por %p73, %p74
      %p76 = scmp.ne.s32.totalorder %s62, %s63
      %p77 = scmp.eq.s32.totalorder %s17, 1
      %p78 = por %p76, %p77
      %p80 = scmp.ne.s32.totalorder %s63, %s79
      %p81 = scmp.eq.s32.totalorder %s17, 0
      %p82 = por %p80, %p81
      %s83 = ssub.s32 %s18, %s30
      %s84 = ssub.s32 %s19, %s26
      %s85 = sor.u32 %s83, %s84
      %p86 = scmp.eq.s32.totalorder %s85, 0
      %s88 = sadd.s32 %s87, 1
      %s89 = scalar_select %p86, %s87, %s88
      %p92 = pneg %p86
      %p93 = scmp.eq.s32.totalorder %s11, 1
      %p94 = por %p92, %p93
      %p95 = scmp.ne.s32.totalorder %s87, %s90
      %p96 = scmp.eq.s32.totalorder %s11, 0
      %p97 = por %p95, %p96
      %p98 = scmp.ne.s32.totalorder %s87, %s90
      %p99 = scmp.eq.s32.totalorder %s16, 1
      %p100 = por %p98, %p99
      %p101 = scmp.ne.s32.totalorder %s90, %s91
      %p102 = scmp.eq.s32.totalorder %s16, 0
      %p103 = por %p101, %p102
      %p104 = scmp.ne.s32.totalorder %s90, %s91
      %p105 = scmp.eq.s32.totalorder %s17, 1
      %p106 = por %p104, %p105
      %p108 = scmp.ne.s32.totalorder %s91, %s107
      %p109 = scmp.eq.s32.totalorder %s17, 0
      %p110 = por %p108, %p109
      %p111 = scmp.le.s32.totalorder 1, %s11
      %p112 = scmp.lt.s32.totalorder %s11, 3
      %p113 = pnand %p111, %p112
      %p114 = pneg %p113
      // Predicated region
      $region9: #{tpu_custom_call.1} parent=5 // pred_check
        _
      $region10: #{tpu_custom_call.1} parent=5 // pred_check_branch
        %116 = sbr.rel (%p113) target = $region12
      $region11: #{tpu_custom_call.1} parent=5 // pred_region
        %s117 = ssub.s32 %s11, 1
        // Predicated region
        $region13: #{tpu_custom_call.1} parent=11 // pred_check
          %p118 = pneg %p49
        $region14: #{tpu_custom_call.1} parent=11 // pred_check_branch
          %120 = sbr.rel (%p118) target = $region16
        $region15: #{tpu_custom_call.1} parent=11 // pred_region
          %s121 = smul.u32 16, %s20
          %p122 = scmp.lt.s32.totalorder %s121, 15
          %s123 = scalar_select %p122, %s121, 15
          %s124 = smul.addr %s123, 4
          %s125 = scalar_lea.vmem %s0, %s124
          %s126 = smul.u32 16, %s20
        $region16: #{tpu_custom_call.1} parent=11 // pred_fallthru
          _
      $region12: #{tpu_custom_call.1} parent=5 // pred_fallthru
        _
      %p127 = scmp.lt.s32.totalorder %s11, 2
      // Predicated region
      $region17: #{tpu_custom_call.1} parent=5 // pred_check
        %p128 = pneg %p127
      $region18: #{tpu_custom_call.1} parent=5 // pred_check_branch
        %130 = sbr.rel (%p128) target = $region20
      $region19: #{tpu_custom_call.1} parent=5 // pred_region
        // Predicated region
        $region21: #{tpu_custom_call.1} parent=19 // pred_check
          %p131 = pneg %p69
        $region22: #{tpu_custom_call.1} parent=19 // pred_check_branch
          %133 = sbr.rel (%p131) target = $region24
        $region23: #{tpu_custom_call.1} parent=19 // pred_region
          %s134 = sand.u32 %s59, 1
          %s135 = sand.u32 %s59, 1
          %s136 = smul.addr %s135, 32
          %s137 = scalar_lea.vmem [#allocation2], %s136
          %s138 = smul.u32 4, %s19
          %s139 = smul.addr %s138, 4
          %s140 = scalar_lea.vmem %s1, %s139
          // Predicated region
          $region25: #{tpu_custom_call.1} parent=23 // pred_check
            _
          $region26: #{tpu_custom_call.1} parent=23 // pred_check_branch
            %142 = sbr.rel (0) target = $region28
          $region27: #{tpu_custom_call.1} parent=23 // pred_region
            // Predicated region
            $region29: #{tpu_custom_call.1} parent=27 // pred_check
              _
            $region30: #{tpu_custom_call.1} parent=27 // pred_check_branch
              %144 = sbr.rel (0) target = $region32
            $region31: #{tpu_custom_call.1} parent=27 // pred_region
              loop: start=0, step=1, limit=1
              $region33: #{tpu_custom_call.1} parent=31 // loop_pre_header
                _
              $region34: #{tpu_custom_call.1} parent=31 // loop_header
                %s146 = sphi 0, %s150
                %p147 = scmp.ge.s32.totalorder %s146, 1
                %s151 = sphi %s140, %s140
                %s152 = sphi %s137, %s137
              $region35: #{tpu_custom_call.1} parent=31 // loop_header_branch
                %149 = sbr.rel (%p147) target = $region39
              $region36: #{tpu_custom_call.1} parent=31 // loop_body
                %v153 = vld [vmem:[%s151] sm:$0xff]
                %154 = vst [vmem:[%s152] sm:$0xff] %v153
                %v155 = vld [vmem:[%s151 + $0x8] sm:$0xff]
                %156 = vst [vmem:[%s152 + $0x8] sm:$0xff] %v155
                %v157 = vld [vmem:[%s151 + $0x20] sm:$0xff]
                %158 = vst [vmem:[%s152 + $0x10] sm:$0xff] %v157
                %v159 = vld [vmem:[%s151 + $0x28] sm:$0xff]
                %160 = vst [vmem:[%s152 + $0x18] sm:$0xff] %v159
              $region37: #{tpu_custom_call.1} parent=31 // loop_footer
                %s150 = sadd.s32 1, %s146
              $region38: #{tpu_custom_call.1} parent=31 // loop_footer_branch
                %145 = sbr.rel target = $region34
              $region39: #{tpu_custom_call.1} parent=31 // loop_exit
                _
            $region32: #{tpu_custom_call.1} parent=27 // pred_fallthru
              _
            // Predicated region
            $region40: #{tpu_custom_call.1} parent=27 // pred_check
              _
            $region41: #{tpu_custom_call.1} parent=27 // pred_check_branch
              %162 = sbr.rel target = $region43
            $region42: #{tpu_custom_call.1} parent=27 // pred_region
              _
            $region43: #{tpu_custom_call.1} parent=27 // pred_fallthru
              _
          $region28: #{tpu_custom_call.1} parent=23 // pred_fallthru
            _
          %163 = vnop
        $region24: #{tpu_custom_call.1} parent=19 // pred_fallthru
          _
      $region20: #{tpu_custom_call.1} parent=5 // pred_fallthru
        _
      %p164 = scmp.le.s32.totalorder 1, %s11
      %p165 = scmp.lt.s32.totalorder %s11, 3
      %p166 = pnand %p164, %p165
      %p167 = pneg %p166
      // Predicated region
      $region44: #{tpu_custom_call.1} parent=5 // pred_check
        _
      $region45: #{tpu_custom_call.1} parent=5 // pred_check_branch
        %169 = sbr.rel (%p166) target = $region47
      $region46: #{tpu_custom_call.1} parent=5 // pred_region
        %s170 = ssub.s32 %s11, 1
        %s171 = sand.u32 %s62, 1
        %s172 = sand.u32 %s62, 1
        %s173 = smul.addr %s172, 32
        %s174 = scalar_lea.vmem [#allocation2], %s173
        // Predicated region
        $region48: #{tpu_custom_call.1} parent=46 // pred_check
          %p175 = pneg %p75
        $region49: #{tpu_custom_call.1} parent=46 // pred_check_branch
          %177 = sbr.rel (%p175) target = $region51
        $region50: #{tpu_custom_call.1} parent=46 // pred_region
          _
        $region51: #{tpu_custom_call.1} parent=46 // pred_fallthru
          _
        %s178 = smul.u32 16, %s20
        %p179 = scmp.lt.s32.totalorder %s178, 15
        %s180 = scalar_select %p179, %s178, 15
        %s181 = smul.addr %s180, 4
        %s182 = scalar_lea.vmem %s0, %s181
        %p183 = pneg %p49
        %p184 = pneg %p46
        %s185 = sand.u32 %s62, 1
        %s186 = sand.u32 %s62, 1
        %s187 = smul.addr %s186, 32
        %s188 = scalar_lea.vmem [#allocation2], %s187
        %p189 = pneg %p75
        %p190 = pneg %p72
        %p191 = pneg %p103
        %p192 = pneg %p100
        %s193 = sand.u32 %s90, 1
        %s194 = scalar_lea.sflag [#allocation4], %s193
        %s195 = sand.u32 %s90, 1
        %s196 = smul.addr %s195, 512
        %s197 = scalar_lea.vmem [#allocation3], %s196
        %s198 = smul.u32 16, %s20
        %p199 = scmp.lt.s32.totalorder %s198, 15
        %s200 = scalar_select %p199, %s198, 15
        %s201 = smul.addr %s200, 4
        %s202 = scalar_lea.vmem %s0, %s201
        %s203 = smul.u32 16, %s20
        %s204 = smul.u32 4, %s21
        %s205 = smul.u32 16, %s20
        %s206 = smul.u32 4, %s21
        %v208 = vld [vmem:[%s202] sm:$0xf]
        %v209 = vld [vmem:[%s202 + $0x4] sm:$0xf]
        %v210 = vld [vmem:[%s202 + $0x8] sm:$0xf]
        %v211 = vld [vmem:[%s202 + $0xc] sm:$0xf]
        %v212 = vld [vmem:[%s202 + $0x10] sm:$0xf]
        %v213 = vld [vmem:[%s202 + $0x14] sm:$0xf]
        %v214 = vld [vmem:[%s202 + $0x18] sm:$0xf]
        %v215 = vld [vmem:[%s202 + $0x1c] sm:$0xf]
        %v216 = vld [vmem:[%s202 + $0x20] sm:$0xf]
        %v217 = vld [vmem:[%s202 + $0x24] sm:$0xf]
        %v218 = vld [vmem:[%s202 + $0x28] sm:$0xf]
        %v219 = vld [vmem:[%s202 + $0x2c] sm:$0xf]
        %v220 = vld [vmem:[%s202 + $0x30] sm:$0xf]
        %v221 = vld [vmem:[%s202 + $0x34] sm:$0xf]
        %v222 = vld [vmem:[%s202 + $0x38] sm:$0xf]
        %v223 = vld [vmem:[%s202 + $0x3c] sm:$0xf]
        %v224 = vld [vmem:[%s174] sm:$0xff]
        %v225 = vld [vmem:[%s174 + $0x8] sm:$0xff]
        %v226 = vld [vmem:[%s174 + $0x10] sm:$0xff]
        %v227 = vld [vmem:[%s174 + $0x18] sm:$0xff]
        %v244 = vunpack.c.l.b16 %v208
        %v245 = vunpack.c.l.b16 %v209
        %v246 = vunpack.c.l.b16 %v210
        %v247 = vunpack.c.l.b16 %v211
        %v248 = vunpack.c.l.b16 %v212
        %v249 = vunpack.c.l.b16 %v213
        %v250 = vunpack.c.l.b16 %v214
        %v251 = vunpack.c.l.b16 %v215
        %v252 = vunpack.c.l.b16 %v216
        %v253 = vunpack.c.l.b16 %v217
        %v254 = vunpack.c.l.b16 %v218
        %v255 = vunpack.c.l.b16 %v219
        %v256 = vunpack.c.l.b16 %v220
        %v257 = vunpack.c.l.b16 %v221
        %v258 = vunpack.c.l.b16 %v222
        %v259 = vunpack.c.l.b16 %v223
        %v260 = vpack.c.b16 %v245, %v244
        %v261 = vpack.c.b16 %v247, %v246
        %v262 = vpack.c.b16 %v249, %v248
        %v263 = vpack.c.b16 %v251, %v250
        %v264 = vpack.c.b16 %v253, %v252
        %v265 = vpack.c.b16 %v255, %v254
        %v266 = vpack.c.b16 %v257, %v256
        %v267 = vpack.c.b16 %v259, %v258
        %v272 = vunpack.c.l.b16 %v224
        %v273 = vunpack.c.h.b16 %v224
        %v274 = vunpack.c.l.b16 %v225
        %v275 = vunpack.c.h.b16 %v225
        %v276 = vunpack.c.l.b16 %v226
        %v277 = vunpack.c.h.b16 %v226
        %v278 = vunpack.c.l.b16 %v227
        %v279 = vunpack.c.h.b16 %v227
        %v280 = vpack.c.b16 %v276, %v272
        %v281 = vpack.c.b16 %v277, %v273
        %v282 = vpack.c.b16 %v278, %v274
        %v283 = vpack.c.b16 %v279, %v275
        %vm288 = vcmask 130048
        %v290 = vsel %vm288, %v260, 0
        %v293 = vsel %vm288, %v261, 0
        %v296 = vsel %vm288, %v262, 0
        %v299 = vsel %vm288, %v263, 0
        %v302 = vsel %vm288, %v264, 0
        %v305 = vsel %vm288, %v265, 0
        %v308 = vsel %vm288, %v266, 0
        %v311 = vsel %vm288, %v267, 0
        %313 = vmatprep.subr.bf16.mxu0 %v281
        %314 = vmatpush1.bf16.msra.mxu0 %v280
        %315 = vmatprep.subr.bf16.mxu0 0
        %316 = vmatpush1.bf16.msra.mxu0 0
        %317 = vmatprep.subr.bf16.mxu0 0
        %318 = vmatpush1.bf16.msra.mxu0 0
        %319 = vmatprep.subr.bf16.mxu0 0
        %320 = vmatpush1.bf16.msra.mxu0 0
        %321 = vmatprep.subr.bf16.mxu0 0
        %322 = vmatpush1.bf16.msra.mxu0 0
        %323 = vmatprep.subr.bf16.mxu0 0
        %324 = vmatpush1.bf16.msra.mxu0 0
        %325 = vmatprep.subr.bf16.mxu0 0
        %326 = vmatpush1.bf16.msra.mxu0 0
        %327 = vmatprep.subr.bf16.mxu0 0
        %328 = vmatpush1.bf16.msra.mxu0 0
        %329 = vmatprep.subr.bf16.mxu0 0
        %330 = vmatpush1.bf16.msra.mxu0 0
        %331 = vmatprep.subr.bf16.mxu0 0
        %332 = vmatpush1.bf16.msra.mxu0 0
        %333 = vmatprep.subr.bf16.mxu0 0
        %334 = vmatpush1.bf16.msra.mxu0 0
        %335 = vmatprep.subr.bf16.mxu0 0
        %336 = vmatpush1.bf16.msra.mxu0 0
        %337 = vmatprep.subr.bf16.mxu0 0
        %338 = vmatpush1.bf16.msra.mxu0 0
        %339 = vmatprep.subr.bf16.mxu0 0
        %340 = vmatpush1.bf16.msra.mxu0 0
        %341 = vmatprep.subr.bf16.mxu0 0
        %342 = vmatpush1.bf16.msra.mxu0 0
        %343 = vmatprep.subr.bf16.mxu0 0
        %344 = vmatpush1.bf16.msra.mxu0 0
        %345 = vmatprep.mubr.bf16.mxu0 0
        %346 = vmatmul.mubr.bf16.gmra.mrb[0].mxu0 %v290
        %v347 = vpop.f32.mrb[0].mxu0
        %v348 = vadd.f32 0.0, %v347
        %v349 = vpop.f32.mrb[0].mxu0
        %v350 = vadd.f32 0.0, %v349
        %v351 = vpop.f32.mrb[0].mxu0
        %v352 = vadd.f32 0.0, %v351
        %v353 = vpop.f32.mrb[0].mxu0
        %v354 = vadd.f32 0.0, %v353
        %355 = vmatprep.mubr.bf16.mxu0 0
        %356 = vmatmul.mubr.bf16.gmra.mrb[0].mxu0 %v293
        %v357 = vpop.f32.mrb[0].mxu0
        %v358 = vadd.f32 0.0, %v357
        %v359 = vpop.f32.mrb[0].mxu0
        %v360 = vadd.f32 0.0, %v359
        %v361 = vpop.f32.mrb[0].mxu0
        %v362 = vadd.f32 0.0, %v361
        %v363 = vpop.f32.mrb[0].mxu0
        %v364 = vadd.f32 0.0, %v363
        %365 = vmatprep.mubr.bf16.mxu0 0
        %366 = vmatmul.mubr.bf16.gmra.mrb[0].mxu0 %v296
        %v367 = vpop.f32.mrb[0].mxu0
        %v368 = vadd.f32 0.0, %v367
        %v369 = vpop.f32.mrb[0].mxu0
        %v370 = vadd.f32 0.0, %v369
        %v371 = vpop.f32.mrb[0].mxu0
        %v372 = vadd.f32 0.0, %v371
        %v373 = vpop.f32.mrb[0].mxu0
        %v374 = vadd.f32 0.0, %v373
        %375 = vmatprep.mubr.bf16.mxu0 0
        %376 = vmatmul.mubr.bf16.gmra.mrb[0].mxu0 %v299
        %v377 = vpop.f32.mrb[0].mxu0
        %v378 = vadd.f32 0.0, %v377
        %v379 = vpop.f32.mrb[0].mxu0
        %v380 = vadd.f32 0.0, %v379
        %v381 = vpop.f32.mrb[0].mxu0
        %v382 = vadd.f32 0.0, %v381
        %v383 = vpop.f32.mrb[0].mxu0
        %v384 = vadd.f32 0.0, %v383
        %385 = vmatprep.mubr.bf16.mxu0 0
        %386 = vmatmul.mubr.bf16.gmra.mrb[0].mxu0 %v302
        %v387 = vpop.f32.mrb[0].mxu0
        %v388 = vadd.f32 0.0, %v387
        %v389 = vpop.f32.mrb[0].mxu0
        %v390 = vadd.f32 0.0, %v389
        %v391 = vpop.f32.mrb[0].mxu0
        %v392 = vadd.f32 0.0, %v391
        %v393 = vpop.f32.mrb[0].mxu0
        %v394 = vadd.f32 0.0, %v393
        %395 = vmatprep.mubr.bf16.mxu0 0
        %396 = vmatmul.mubr.bf16.gmra.mrb[0].mxu0 %v305
        %v397 = vpop.f32.mrb[0].mxu0
        %v398 = vadd.f32 0.0, %v397
        %v399 = vpop.f32.mrb[0].mxu0
        %v400 = vadd.f32 0.0, %v399
        %v401 = vpop.f32.mrb[0].mxu0
        %v402 = vadd.f32 0.0, %v401
        %v403 = vpop.f32.mrb[0].mxu0
        %v404 = vadd.f32 0.0, %v403
        %405 = vmatprep.mubr.bf16.mxu0 0
        %406 = vmatmul.mubr.bf16.gmra.mrb[0].mxu0 %v308
        %v407 = vpop.f32.mrb[0].mxu0
        %v408 = vadd.f32 0.0, %v407
        %v409 = vpop.f32.mrb[0].mxu0
        %v410 = vadd.f32 0.0, %v409
        %v411 = vpop.f32.mrb[0].mxu0
        %v412 = vadd.f32 0.0, %v411
        %v413 = vpop.f32.mrb[0].mxu0
        %v414 = vadd.f32 0.0, %v413
        %415 = vmatprep.mubr.bf16.mxu0 0
        %416 = vmatmul.mubr.bf16.gmra.mrb[0].mxu0 %v311
        %v417 = vpop.f32.mrb[0].mxu0
        %v418 = vadd.f32 0.0, %v417
        %v419 = vpop.f32.mrb[0].mxu0
        %v420 = vadd.f32 0.0, %v419
        %v421 = vpop.f32.mrb[0].mxu0
        %v422 = vadd.f32 0.0, %v421
        %v423 = vpop.f32.mrb[0].mxu0
        %v424 = vadd.f32 0.0, %v423
        %425 = vdwg.mxu0
        %426 = vmatprep.subr.bf16.mxu0 %v283
        %427 = vmatpush1.bf16.msra.mxu0 %v282
        %428 = vmatprep.subr.bf16.mxu0 0
        %429 = vmatpush1.bf16.msra.mxu0 0
        %430 = vmatprep.subr.bf16.mxu0 0
        %431 = vmatpush1.bf16.msra.mxu0 0
        %432 = vmatprep.subr.bf16.mxu0 0
        %433 = vmatpush1.bf16.msra.mxu0 0
        %434 = vmatprep.subr.bf16.mxu0 0
        %435 = vmatpush1.bf16.msra.mxu0 0
        %436 = vmatprep.subr.bf16.mxu0 0
        %437 = vmatpush1.bf16.msra.mxu0 0
        %438 = vmatprep.subr.bf16.mxu0 0
        %439 = vmatpush1.bf16.msra.mxu0 0
        %440 = vmatprep.subr.bf16.mxu0 0
        %441 = vmatpush1.bf16.msra.mxu0 0
        %442 = vmatprep.subr.bf16.mxu0 0
        %443 = vmatpush1.bf16.msra.mxu0 0
        %444 = vmatprep.subr.bf16.mxu0 0
        %445 = vmatpush1.bf16.msra.mxu0 0
        %446 = vmatprep.subr.bf16.mxu0 0
        %447 = vmatpush1.bf16.msra.mxu0 0
        %448 = vmatprep.subr.bf16.mxu0 0
        %449 = vmatpush1.bf16.msra.mxu0 0
        %450 = vmatprep.subr.bf16.mxu0 0
        %451 = vmatpush1.bf16.msra.mxu0 0
        %452 = vmatprep.subr.bf16.mxu0 0
        %453 = vmatpush1.bf16.msra.mxu0 0
        %454 = vmatprep.subr.bf16.mxu0 0
        %455 = vmatpush1.bf16.msra.mxu0 0
        %456 = vmatprep.subr.bf16.mxu0 0
        %457 = vmatpush1.bf16.msra.mxu0 0
        %458 = vmatprep.mubr.bf16.mxu0 0
        %459 = vmatmul.mubr.bf16.gmra.mrb[0].mxu0 %v290
        %v460 = vpop.f32.mrb[0].mxu0
        %v461 = vadd.f32 0.0, %v460
        %v462 = vpop.f32.mrb[0].mxu0
        %v463 = vadd.f32 0.0, %v462
        %v464 = vpop.f32.mrb[0].mxu0
        %v465 = vadd.f32 0.0, %v464
        %v466 = vpop.f32.mrb[0].mxu0
        %v467 = vadd.f32 0.0, %v466
        %468 = vmatprep.mubr.bf16.mxu0 0
        %469 = vmatmul.mubr.bf16.gmra.mrb[0].mxu0 %v293
        %v470 = vpop.f32.mrb[0].mxu0
        %v471 = vadd.f32 0.0, %v470
        %v472 = vpop.f32.mrb[0].mxu0
        %v473 = vadd.f32 0.0, %v472
        %v474 = vpop.f32.mrb[0].mxu0
        %v475 = vadd.f32 0.0, %v474
        %v476 = vpop.f32.mrb[0].mxu0
        %v477 = vadd.f32 0.0, %v476
        %478 = vmatprep.mubr.bf16.mxu0 0
        %479 = vmatmul.mubr.bf16.gmra.mrb[0].mxu0 %v296
        %v480 = vpop.f32.mrb[0].mxu0
        %v481 = vadd.f32 0.0, %v480
        %v482 = vpop.f32.mrb[0].mxu0
        %v483 = vadd.f32 0.0, %v482
        %v484 = vpop.f32.mrb[0].mxu0
        %v485 = vadd.f32 0.0, %v484
        %v486 = vpop.f32.mrb[0].mxu0
        %v487 = vadd.f32 0.0, %v486
        %488 = vmatprep.mubr.bf16.mxu0 0
        %489 = vmatmul.mubr.bf16.gmra.mrb[0].mxu0 %v299
        %v490 = vpop.f32.mrb[0].mxu0
        %v491 = vadd.f32 0.0, %v490
        %v492 = vpop.f32.mrb[0].mxu0
        %v493 = vadd.f32 0.0, %v492
        %v494 = vpop.f32.mrb[0].mxu0
        %v495 = vadd.f32 0.0, %v494
        %v496 = vpop.f32.mrb[0].mxu0
        %v497 = vadd.f32 0.0, %v496
        %498 = vmatprep.mubr.bf16.mxu0 0
        %499 = vmatmul.mubr.bf16.gmra.mrb[0].mxu0 %v302
        %v500 = vpop.f32.mrb[0].mxu0
        %v501 = vadd.f32 0.0, %v500
        %v502 = vpop.f32.mrb[0].mxu0
        %v503 = vadd.f32 0.0, %v502
        %v504 = vpop.f32.mrb[0].mxu0
        %v505 = vadd.f32 0.0, %v504
        %v506 = vpop.f32.mrb[0].mxu0
        %v507 = vadd.f32 0.0, %v506
        %508 = vmatprep.mubr.bf16.mxu0 0
        %509 = vmatmul.mubr.bf16.gmra.mrb[0].mxu0 %v305
        %v510 = vpop.f32.mrb[0].mxu0
        %v511 = vadd.f32 0.0, %v510
        %v512 = vpop.f32.mrb[0].mxu0
        %v513 = vadd.f32 0.0, %v512
        %v514 = vpop.f32.mrb[0].mxu0
        %v515 = vadd.f32 0.0, %v514
        %v516 = vpop.f32.mrb[0].mxu0
        %v517 = vadd.f32 0.0, %v516
        %518 = vmatprep.mubr.bf16.mxu0 0
        %519 = vmatmul.mubr.bf16.gmra.mrb[0].mxu0 %v308
        %v520 = vpop.f32.mrb[0].mxu0
        %v521 = vadd.f32 0.0, %v520
        %v522 = vpop.f32.mrb[0].mxu0
        %v523 = vadd.f32 0.0, %v522
        %v524 = vpop.f32.mrb[0].mxu0
        %v525 = vadd.f32 0.0, %v524
        %v526 = vpop.f32.mrb[0].mxu0
        %v527 = vadd.f32 0.0, %v526
        %528 = vmatprep.mubr.bf16.mxu0 0
        %529 = vmatmul.mubr.bf16.gmra.mrb[0].mxu0 %v311
        %v530 = vpop.f32.mrb[0].mxu0
        %v531 = vadd.f32 0.0, %v530
        %v532 = vpop.f32.mrb[0].mxu0
        %v533 = vadd.f32 0.0, %v532
        %v534 = vpop.f32.mrb[0].mxu0
        %v535 = vadd.f32 0.0, %v534
        %v536 = vpop.f32.mrb[0].mxu0
        %v537 = vadd.f32 0.0, %v536
        %538 = vdwg.mxu0
        %539 = vst [vmem:[%s197] sm:$0xff] %v348
        %540 = vst [vmem:[%s197 + $0x8] sm:$0xff] %v350
        %541 = vst [vmem:[%s197 + $0x10] sm:$0xff] %v461
        %542 = vst [vmem:[%s197 + $0x18] sm:$0xff] %v463
        %543 = vst [vmem:[%s197 + $0x20] sm:$0xff] %v352
        %544 = vst [vmem:[%s197 + $0x28] sm:$0xff] %v354
        %545 = vst [vmem:[%s197 + $0x30] sm:$0xff] %v465
        %546 = vst [vmem:[%s197 + $0x38] sm:$0xff] %v467
        %547 = vst [vmem:[%s197 + $0x40] sm:$0xff] %v358
        %548 = vst [vmem:[%s197 + $0x48] sm:$0xff] %v360
        %549 = vst [vmem:[%s197 + $0x50] sm:$0xff] %v471
        %550 = vst [vmem:[%s197 + $0x58] sm:$0xff] %v473
        %551 = vst [vmem:[%s197 + $0x60] sm:$0xff] %v362
        %552 = vst [vmem:[%s197 + $0x68] sm:$0xff] %v364
        %553 = vst [vmem:[%s197 + $0x70] sm:$0xff] %v475
        %554 = vst [vmem:[%s197 + $0x78] sm:$0xff] %v477
        %555 = vst [vmem:[%s197 + $0x80] sm:$0xff] %v368
        %556 = vst [vmem:[%s197 + $0x88] sm:$0xff] %v370
        %557 = vst [vmem:[%s197 + $0x90] sm:$0xff] %v481
        %558 = vst [vmem:[%s197 + $0x98] sm:$0xff] %v483
        %559 = vst [vmem:[%s197 + $0xa0] sm:$0xff] %v372
        %560 = vst [vmem:[%s197 + $0xa8] sm:$0xff] %v374
        %561 = vst [vmem:[%s197 + $0xb0] sm:$0xff] %v485
        %562 = vst [vmem:[%s197 + $0xb8] sm:$0xff] %v487
        %563 = vst [vmem:[%s197 + $0xc0] sm:$0xff] %v378
        %564 = vst [vmem:[%s197 + $0xc8] sm:$0xff] %v380
        %565 = vst [vmem:[%s197 + $0xd0] sm:$0xff] %v491
        %566 = vst [vmem:[%s197 + $0xd8] sm:$0xff] %v493
        %567 = vst [vmem:[%s197 + $0xe0] sm:$0xff] %v382
        %568 = vst [vmem:[%s197 + $0xe8] sm:$0xff] %v384
        %569 = vst [vmem:[%s197 + $0xf0] sm:$0xff] %v495
        %570 = vst [vmem:[%s197 + $0xf8] sm:$0xff] %v497
        %571 = vst [vmem:[%s197 + $0x100] sm:$0xff] %v388
        %572 = vst [vmem:[%s197 + $0x108] sm:$0xff] %v390
        %573 = vst [vmem:[%s197 + $0x110] sm:$0xff] %v501
        %574 = vst [vmem:[%s197 + $0x118] sm:$0xff] %v503
        %575 = vst [vmem:[%s197 + $0x120] sm:$0xff] %v392
        %576 = vst [vmem:[%s197 + $0x128] sm:$0xff] %v394
        %577 = vst [vmem:[%s197 + $0x130] sm:$0xff] %v505
        %578 = vst [vmem:[%s197 + $0x138] sm:$0xff] %v507
        %579 = vst [vmem:[%s197 + $0x140] sm:$0xff] %v398
        %580 = vst [vmem:[%s197 + $0x148] sm:$0xff] %v400
        %581 = vst [vmem:[%s197 + $0x150] sm:$0xff] %v511
        %582 = vst [vmem:[%s197 + $0x158] sm:$0xff] %v513
        %583 = vst [vmem:[%s197 + $0x160] sm:$0xff] %v402
        %584 = vst [vmem:[%s197 + $0x168] sm:$0xff] %v404
        %585 = vst [vmem:[%s197 + $0x170] sm:$0xff] %v515
        %586 = vst [vmem:[%s197 + $0x178] sm:$0xff] %v517
        %587 = vst [vmem:[%s197 + $0x180] sm:$0xff] %v408
        %588 = vst [vmem:[%s197 + $0x188] sm:$0xff] %v410
        %589 = vst [vmem:[%s197 + $0x190] sm:$0xff] %v521
        %590 = vst [vmem:[%s197 + $0x198] sm:$0xff] %v523
        %591 = vst [vmem:[%s197 + $0x1a0] sm:$0xff] %v412
        %592 = vst [vmem:[%s197 + $0x1a8] sm:$0xff] %v414
        %593 = vst [vmem:[%s197 + $0x1b0] sm:$0xff] %v525
        %594 = vst [vmem:[%s197 + $0x1b8] sm:$0xff] %v527
        %595 = vst [vmem:[%s197 + $0x1c0] sm:$0xff] %v418
        %596 = vst [vmem:[%s197 + $0x1c8] sm:$0xff] %v420
        %597 = vst [vmem:[%s197 + $0x1d0] sm:$0xff] %v531
        %598 = vst [vmem:[%s197 + $0x1d8] sm:$0xff] %v533
        %599 = vst [vmem:[%s197 + $0x1e0] sm:$0xff] %v422
        %600 = vst [vmem:[%s197 + $0x1e8] sm:$0xff] %v424
        %601 = vst [vmem:[%s197 + $0x1f0] sm:$0xff] %v535
        %602 = vst [vmem:[%s197 + $0x1f8] sm:$0xff] %v537
        %s603 = sand.u32 %s90, 1
        %s604 = scalar_lea.sflag [#allocation4], %s603
        %s605 = sand.u32 %s90, 1
        %s606 = smul.addr %s605, 512
        %s607 = scalar_lea.vmem [#allocation3], %s606
        // Predicated region
        $region52: #{tpu_custom_call.1} parent=46 // pred_check
          %p608 = pneg %p100
        $region53: #{tpu_custom_call.1} parent=46 // pred_check_branch
          %610 = sbr.rel (%p608) target = $region55
        $region54: #{tpu_custom_call.1} parent=46 // pred_region
          %s611 = smul.u32 16, %s20
          %s612 = smul.u32 4, %s21
          %s614 = ssub.s32 8192, 8192
          %615 = vsyncadd %s604, %s614
          %s616 = smul.addr %s611, 8
          %s617 = sadd.s32 %s612, %s616
          %s618 = smul.addr %s617, 128
          %s619 = scalar_lea.hbm %s2, %s618
          %s620 = sshll.u32 %s607, 4
          %s621 = int_to_ptr.vmem [resolvable:$true] %s620
          %626 = dma.vmem_to_hbm [thread:$0]  %s621, 8192, %s619, %s604, 512, 1024, 32
        $region55: #{tpu_custom_call.1} parent=46 // pred_fallthru
          _
      $region47: #{tpu_custom_call.1} parent=5 // pred_fallthru
        _
      %p627 = scmp.le.s32.totalorder 2, %s11
      // Predicated region
      $region56: #{tpu_custom_call.1} parent=5 // pred_check
        %p628 = pneg %p627
      $region57: #{tpu_custom_call.1} parent=5 // pred_check_branch
        %630 = sbr.rel (%p628) target = $region59
      $region58: #{tpu_custom_call.1} parent=5 // pred_region
        %s631 = ssub.s32 %s11, 2
        // Predicated region
        $region60: #{tpu_custom_call.1} parent=58 // pred_check
          %p632 = pneg %p106
        $region61: #{tpu_custom_call.1} parent=58 // pred_check_branch
          %634 = sbr.rel (%p632) target = $region63
        $region62: #{tpu_custom_call.1} parent=58 // pred_region
          %s635 = sand.u32 %s91, 1
          %s636 = scalar_lea.sflag [#allocation4], %s635
          %s637 = sand.u32 %s91, 1
          %s638 = smul.addr %s637, 512
          %s639 = scalar_lea.vmem [#allocation3], %s638
          %640 = dma.done %s636, 8192
        $region63: #{tpu_custom_call.1} parent=58 // pred_fallthru
          _
      $region59: #{tpu_custom_call.1} parent=5 // pred_fallthru
        _
    $region6: #{tpu_custom_call.1} parent=1 // loop_footer
      %s15 = sadd.s32 1, %s11
    $region7: #{tpu_custom_call.1} parent=1 // loop_footer_branch
      %10 = sbr.rel target = $region3
    $region8: #{tpu_custom_call.1} parent=1 // loop_exit
      _
    %641 = vsyncpa [#allocation4], 1
    %s642 = scalar_lea.sflag [#allocation4], 1
    %643 = vsyncpa %s642, 1

</llo_original>
